<compile_context>
chip_gen: v7x
topology: tpu7x:2x2x1
jax: 0.10.0
libtpu: 0.0.40
codegen_flags: <defaults>
</compile_context>

<pallas_src>
import functools

import jax
import jax.numpy as jnp
import numpy as np
from jax import lax
from jax.experimental import pallas as pl
from jax.experimental.pallas import tpu as pltpu

# < 64 MiB physical per-TC VMEM on v7x; ample headroom on v5e/v6e (128 MiB).
_VMEM_LIMIT = 48 * 1024 * 1024


# ----------------------------------------------------------------------------
# helpers
# ----------------------------------------------------------------------------
def _pick_tile(dim, target, align, floor=128):
    """Largest `align`-aligned divisor of `dim` in [floor, target]; else full dim.

    Falling back to the full dim (instead of a tiny divisor) keeps the MXU M/N
    dimensions large for awkward sizes.
    """
    if dim <= target:
        return dim
    t = (target // align) * align
    lo = max(floor, align)
    while t >= lo:
        if dim % t == 0:
            return t
        t -= align
    # TODO(synk): pad + mask ragged dims instead of falling back to the full dim.
    return dim


# ----------------------------------------------------------------------------
# Tiled linear:  o = x @ W^T + b    (W^T passed in, bias added at the K-flush)
# bf16 operands, f32 accumulation.
# ----------------------------------------------------------------------------
def _linear_kernel(x_ref, wt_ref, b_ref, o_ref, acc_ref):
    k = pl.program_id(2)

    @pl.when(k == 0)
    def _():
        acc_ref[...] = jnp.zeros_like(acc_ref)

    acc_ref[...] += jnp.dot(x_ref[...], wt_ref[...],
                            preferred_element_type=jnp.float32)

    @pl.when(k == pl.num_programs(2) - 1)
    def _():
        o_ref[...] = (acc_ref[...] + b_ref[...].astype(jnp.float32)
                      ).astype(o_ref.dtype)


def pallas_linear(x2d, wt, b, *, out_dtype=None, tm=512, tn=512, tk=512):
    """x2d: (M, K) bf16, wt: (K, Nout) = W^T bf16, b: (Nout,) f32 -> (M, Nout)."""
    M, K = x2d.shape
    K2, Nout = wt.shape
    assert K2 == K
    out_dtype = out_dtype or x2d.dtype
    tm = _pick_tile(M, tm, 8)
    tn = _pick_tile(Nout, tn, 128)
    tk = _pick_tile(K, tk, 128)
    grid = (M // tm, Nout // tn, K // tk)
    itemsize = x2d.dtype.itemsize
    cost = pl.CostEstimate(
        flops=int(2 * M * K * Nout),
        transcendentals=0,
        bytes_accessed=int((M * K + K * Nout * (M // tm) + M * Nout) * itemsize
                           + Nout * 4))
    # TODO(synk): if the K-stream DMA shows up exposed in a bundle profile, add
    #             pipeline_mode=pl.Buffered(3) to the wt BlockSpec below.
    return pl.pallas_call(
        _linear_kernel,
        out_shape=jax.ShapeDtypeStruct((M, Nout), out_dtype),
        grid=grid,
        in_specs=[
            pl.BlockSpec((tm, tk), lambda i, j, k: (i, k)),
            pl.BlockSpec((tk, tn), lambda i, j, k: (k, j)),
            pl.BlockSpec((1, tn), lambda i, j, k: (0, j)),
        ],
        out_specs=pl.BlockSpec((tm, tn), lambda i, j, k: (i, j)),
        scratch_shapes=[pltpu.VMEM((tm, tn), jnp.float32)],
        compiler_params=pltpu.CompilerParams(
            dimension_semantics=("parallel", "parallel", "arbitrary"),
            vmem_limit_bytes=_VMEM_LIMIT),
        cost_estimate=cost,
    )(x2d, wt, b.reshape(1, Nout).astype(jnp.float32))


# ----------------------------------------------------------------------------
# Flash attention, head axis on the grid.  qkvt: (3, H, B, N, hd) bf16, the softmax
# scale is already folded into q.  Output: (B, H, N, hd) bf16.
# ----------------------------------------------------------------------------
def _flash_attn_kernel(*refs, has_mask):
    if has_mask:
        q_ref, k_ref, v_ref, mask_ref, o_ref, m_ref, l_ref, acc_ref = refs
    else:
        q_ref, k_ref, v_ref, o_ref, m_ref, l_ref, acc_ref = refs
        mask_ref = None

    ki = pl.program_id(3)

    @pl.when(ki == 0)
    def _():
        m_ref[...] = jnp.full_like(m_ref, -jnp.inf)
        l_ref[...] = jnp.zeros_like(l_ref)
        acc_ref[...] = jnp.zeros_like(acc_ref)

    q = q_ref[...]                       # (tq, hd)  bf16, scale pre-folded
    k = k_ref[...]                       # (tkv, hd) bf16
    v = v_ref[...]                       # (tkv, hd) bf16

    # Scores (tq, tkv): contraction over hd for both operands -> no relayouts.
    s = lax.dot_general(q, k, (((1,), (1,)), ((), ())),
                        preferred_element_type=jnp.float32)
    if mask_ref is not None:
        # NOTE: fully -inf masked rows are not handled (would NaN); finite masks only.
        s = s + mask_ref[...].astype(jnp.float32)

    m_prev = m_ref[...]                                   # (tq, 1)
    m_new = jnp.maximum(m_prev, s.max(axis=-1, keepdims=True))
    alpha = jnp.exp(m_prev - m_new)
    p = jnp.exp(s - m_new)                                # (tq, tkv) f32
    l_ref[...] = alpha * l_ref[...] + p.sum(axis=-1, keepdims=True)
    acc_ref[...] = alpha * acc_ref[...] + jnp.dot(
        p.astype(v.dtype), v, preferred_element_type=jnp.float32)
    m_ref[...] = m_new

    @pl.when(ki == pl.num_programs(3) - 1)
    def _():
        inv_l = pl.reciprocal(l_ref[...], approx=False)   # exact, still EUP
        o_ref[...] = (acc_ref[...] * inv_l).astype(o_ref.dtype)


def pallas_flash_attention(qkvt, attn_mask=None, *, tq=256, tkv=256):
    """qkvt: (3, H, B, N, hd); attn_mask: (N, N) additive or None -> (B, H, N, hd)."""
    three, H, B, N, hd = qkvt.shape
    assert three == 3
    tq = _pick_tile(N, tq, 8)
    tkv = _pick_tile(N, tkv, 128)
    grid = (B, H, N // tq, N // tkv)     # parallel extent B*H*(N//tq): shards across
    has_mask = attn_mask is not None     # both v7x TensorCores for any real H.

    q_spec = pl.BlockSpec((None, None, None, tq, hd),
                          lambda b, h, qi, ki: (0, h, b, qi, 0))
    k_spec = pl.BlockSpec((None, None, None, tkv, hd),
                          lambda b, h, qi, ki: (1, h, b, ki, 0))
    v_spec = pl.BlockSpec((None, None, None, tkv, hd),
                          lambda b, h, qi, ki: (2, h, b, ki, 0))
    out_spec = pl.BlockSpec((None, None, tq, hd),
                            lambda b, h, qi, ki: (b, h, qi, 0))

    in_specs = [q_spec, k_spec, v_spec]
    inputs = [qkvt, qkvt, qkvt]
    if has_mask:
        in_specs.append(pl.BlockSpec((tq, tkv), lambda b, h, qi, ki: (qi, ki)))
        inputs.append(attn_mask.astype(jnp.float32))

    itemsize = qkvt.dtype.itemsize
    bytes_accessed = B * H * N * hd * itemsize * (2 + 2 * (N // tq))
    if has_mask:
        bytes_accessed += B * H * N * N * 4
    cost = pl.CostEstimate(
        flops=int(4 * B * H * N * N * hd),
        transcendentals=int(B * H * N * N),
        bytes_accessed=int(bytes_accessed))

    kernel = functools.partial(_flash_attn_kernel, has_mask=has_mask)
    return pl.pallas_call(
        kernel,
        out_shape=jax.ShapeDtypeStruct((B, H, N, hd), qkvt.dtype),
        grid=grid,
        in_specs=in_specs,
        out_specs=out_spec,
        scratch_shapes=[
            pltpu.VMEM((tq, 1), jnp.float32),    # running max
            pltpu.VMEM((tq, 1), jnp.float32),    # running denom
            pltpu.VMEM((tq, hd), jnp.float32),   # output accumulator
        ],
        compiler_params=pltpu.CompilerParams(
            dimension_semantics=("parallel", "parallel", "parallel", "arbitrary"),
            vmem_limit_bytes=_VMEM_LIMIT),
        cost_estimate=cost,
    )(*inputs)


# ----------------------------------------------------------------------------
# One-time parameter preparation (out of the per-call hot path):
#  - LoRA merge into k/v weights, W^T layout, softmax scale folded into q, bf16 cast.
# ----------------------------------------------------------------------------
def prepare_params(params, num_heads, apply_lora=True, compute_dtype=jnp.bfloat16):
    qkv_w = params["qkv_w"]                              # (3C, C), rows [q; k; v]
    C = qkv_w.shape[1]
    hd = C // num_heads
    scale = hd ** (-0.5)
    q_w, k_w, v_w = jnp.split(qkv_w, 3, axis=0)
    if apply_lora:
        k_w = k_w + params["lora_B_k"] @ params["lora_A_k"]
        v_w = v_w + params["lora_B_v"] @ params["lora_A_v"]
    wt = jnp.concatenate([scale * q_w.T, k_w.T, v_w.T], axis=1)     # (C, 3C)
    qkv_b = params["qkv_b"]
    qkv_b = jnp.concatenate([scale * qkv_b[:C], qkv_b[C:]])
    return {
        "qkv_wt": wt.astype(compute_dtype),
        "qkv_b": qkv_b.astype(jnp.float32),
        "proj_wt": params["proj_w"].T.astype(compute_dtype),
        "proj_b": params["proj_b"].astype(jnp.float32),
    }


# ----------------------------------------------------------------------------
# Forward pass (MultiHeadAttention_LoRA.forward semantics)
# ----------------------------------------------------------------------------
def mha_lora_forward(x, prep, num_heads, attn_mask=None):
    B, N, C = x.shape
    hd = C // num_heads

    xb = x.astype(prep["qkv_wt"].dtype)

    # QKV projection (tiled Pallas matmul, fused bias, LoRA/scale already in weights).
    qkv = pallas_linear(xb.reshape(B * N, C), prep["qkv_wt"], prep["qkv_b"])  # (B*N, 3C)

    # (B,N,3,H,hd) -> (3,H,B,N,hd): one fused XLA permute so the attention kernel
    # reads contiguous per-head blocks with zero in-kernel relayouts.
    qkvt = jnp.transpose(qkv.reshape(B, N, 3, num_heads, hd), (2, 3, 0, 1, 4))

    attn_out = pallas_flash_attention(qkvt, attn_mask)          # (B, H, N, hd)

    # (B,H,N,hd) -> (B,N,C): matches the PyTorch .transpose(1,2).reshape(B,N,C).
    attn_out = jnp.transpose(attn_out, (0, 2, 1, 3)).reshape(B * N, C)

    # Output projection (tiled Pallas matmul, fused bias), back to the input dtype.
    out = pallas_linear(attn_out, prep["proj_wt"], prep["proj_b"], out_dtype=x.dtype)
    return out.reshape(B, N, C)


# ----------------------------------------------------------------------------
# Pure-JAX f32 reference for correctness checking.
# ----------------------------------------------------------------------------
def reference_forward(x, params, num_heads, apply_lora=True, attn_mask=None):
    B, N, C = x.shape
    hd = C // num_heads
    scale = hd ** (-0.5)
    qw, kw, vw = jnp.split(params["qkv_w"], 3, axis=0)
    if apply_lora:
        kw = kw + params["lora_B_k"] @ params["lora_A_k"]
        vw = vw + params["lora_B_v"] @ params["lora_A_v"]
    w = jnp.concatenate([qw, kw, vw], axis=0)
    qkv = x @ w.T + params["qkv_b"]
    qkv = qkv.reshape(B, N, 3, num_heads, hd).transpose(2, 0, 3, 1, 4)
    q, k, v = qkv[0], qkv[1], qkv[2]
    attn = jnp.einsum("bhqd,bhkd->bhqk", q, k) * scale
    if attn_mask is not None:
        attn = attn + attn_mask
    attn = jax.nn.softmax(attn, axis=-1)
    out = jnp.einsum("bhqk,bhkd->bhqd", attn, v)
    out = out.transpose(0, 2, 1, 3).reshape(B, N, C)
    return out @ params["proj_w"].T + params["proj_b"]


def init_params(key, dim, lora_rank):
    ks = jax.random.split(key, 8)
    s = 0.02
    return {
        "qkv_w": s * jax.random.normal(ks[0], (3 * dim, dim), jnp.float32),
        "qkv_b": s * jax.random.normal(ks[1], (3 * dim,), jnp.float32),
        "proj_w": s * jax.random.normal(ks[2], (dim, dim), jnp.float32),
        "proj_b": s * jax.random.normal(ks[3], (dim,), jnp.float32),
        "lora_A_k": s * jax.random.normal(ks[4], (lora_rank, dim), jnp.float32),
        "lora_B_k": s * jax.random.normal(ks[5], (dim, lora_rank), jnp.float32),
        "lora_A_v": s * jax.random.normal(ks[6], (lora_rank, dim), jnp.float32),
        "lora_B_v": s * jax.random.normal(ks[7], (dim, lora_rank), jnp.float32),
    }


if __name__ == "__main__":
    B, N, C = 2, 8, 32
    num_heads = 4
    lora_rank = 10

    key = jax.random.PRNGKey(0)
    k_x, k_p, k_m = jax.random.split(key, 3)
    x = jax.random.normal(k_x, (B, N, C), jnp.float32)
    params = init_params(k_p, C, lora_rank)
    mask = 0.5 * jax.random.normal(k_m, (N, N), jnp.float32)

    # One-time weight preparation (LoRA merge + transpose + scale fold + bf16 cast).
    prep = prepare_params(params, num_heads, apply_lora=True)

    fwd_nomask = jax.jit(lambda xx, pp: mha_lora_forward(xx, pp, num_heads))
    fwd_mask = jax.jit(lambda xx, pp, mm: mha_lora_forward(xx, pp, num_heads, attn_mask=mm))

    out = jax.block_until_ready(fwd_nomask(x, prep))
    ref = reference_forward(x, params, num_heads, apply_lora=True)
    # Tolerance covers bf16 MXU operands vs. the f32 reference.
    np.testing.assert_allclose(np.asarray(out), np.asarray(ref), rtol=5e-2, atol=2e-3)

    out_m = jax.block_until_ready(fwd_mask(x, prep, mask))
    ref_m = reference_forward(x, params, num_heads, apply_lora=True, attn_mask=mask)
    np.testing.assert_allclose(np.asarray(out_m), np.asarray(ref_m), rtol=5e-2, atol=2e-3)

    print("KERNEL_OK")
</pallas_src>

<mosaic_0001>
module attributes {stable_mosaic.version = 11 : i64} {
  func.func @_linear_kernel(%arg0: i32, %arg1: i32, %arg2: i32, %arg3: memref<16x32xbf16, #tpu.memory_space<vmem>>, %arg4: memref<32x96xbf16, #tpu.memory_space<vmem>>, %arg5: memref<1x96xf32, #tpu.memory_space<vmem>>, %arg6: memref<16x96xbf16, #tpu.memory_space<vmem>>, %arg7: memref<16x96xf32, #tpu.memory_space<vmem>>) attributes {dimension_semantics = [#tpu.dimension_semantics<parallel>, #tpu.dimension_semantics<parallel>, #tpu.dimension_semantics<arbitrary>], iteration_bounds = array<i64: 1, 1, 1>, scalar_prefetch = 0 : i64, scratch_operands = 1 : i64, tpu.core_type = #tpu.core_type<tc>, window_params = [{transform_indices = @transform_0, window_bounds = array<i64: 16, 32>}, {transform_indices = @transform_1, window_bounds = array<i64: 32, 96>}, {transform_indices = @transform_2, window_bounds = array<i64: 1, 96>}, {transform_indices = @transform_3, window_bounds = array<i64: 16, 96>}]} {
    %c0_i32 = arith.constant 0 : i32
    %0 = arith.cmpi eq, %arg2, %c0_i32 : i32
    %1 = arith.extui %0 : i1 to i32
    %c0_i32_0 = arith.constant 0 : i32
    %2 = arith.cmpi ne, %1, %c0_i32_0 : i32
    scf.if %2 {
      %cst_10 = arith.constant 0.000000e+00 : f32
      %12 = vector.broadcast %cst_10 : f32 to vector<16x96xf32>
      %c0_11 = arith.constant 0 : index
      %c0_12 = arith.constant 0 : index
      %13 = vector.load %arg7[%c0_11, %c0_12] : memref<16x96xf32, #tpu.memory_space<vmem>>, vector<16x96xf32>
      tpu.vector_store %arg7[%c0_11, %c0_12], %12 {strides = array<i32>} : memref<16x96xf32, #tpu.memory_space<vmem>>, vector<16x96xf32>,
    } else {
    }
    %c0 = arith.constant 0 : index
    %c0_1 = arith.constant 0 : index
    %3 = vector.load %arg7[%c0, %c0_1] : memref<16x96xf32, #tpu.memory_space<vmem>>, vector<16x96xf32>
    %c0_2 = arith.constant 0 : index
    %c0_3 = arith.constant 0 : index
    %4 = vector.load %arg3[%c0_2, %c0_3] : memref<16x32xbf16, #tpu.memory_space<vmem>>, vector<16x32xbf16>
    %c0_4 = arith.constant 0 : index
    %c0_5 = arith.constant 0 : index
    %5 = vector.load %arg4[%c0_4, %c0_5] : memref<32x96xbf16, #tpu.memory_space<vmem>>, vector<32x96xbf16>
    %cst = arith.constant dense<0.000000e+00> : vector<16x96xf32>
    %6 = tpu.matmul %4, %5, %cst {dimension_numbers = #tpu.dot_dimension_numbers<[1], [0], [0], [1], [0, 0, 1, 1], [], []>} : vector<16x32xbf16>, vector<32x96xbf16>, vector<16x96xf32> -> vector<16x96xf32>
    %7 = arith.addf %3, %6 : vector<16x96xf32>
    %c0_6 = arith.constant 0 : index
    %c0_7 = arith.constant 0 : index
    %8 = vector.load %arg7[%c0_6, %c0_7] : memref<16x96xf32, #tpu.memory_space<vmem>>, vector<16x96xf32>
    tpu.vector_store %arg7[%c0_6, %c0_7], %7 {strides = array<i32>} : memref<16x96xf32, #tpu.memory_space<vmem>>, vector<16x96xf32>,
    %c0_i32_8 = arith.constant 0 : i32
    %9 = arith.cmpi eq, %arg2, %c0_i32_8 : i32
    %10 = arith.extui %9 : i1 to i32
    %c0_i32_9 = arith.constant 0 : i32
    %11 = arith.cmpi ne, %10, %c0_i32_9 : i32
    scf.if %11 {
      %c0_10 = arith.constant 0 : index
      %c0_11 = arith.constant 0 : index
      %12 = vector.load %arg7[%c0_10, %c0_11] : memref<16x96xf32, #tpu.memory_space<vmem>>, vector<16x96xf32>
      %c0_12 = arith.constant 0 : index
      %c0_13 = arith.constant 0 : index
      %13 = vector.load %arg5[%c0_12, %c0_13] : memref<1x96xf32, #tpu.memory_space<vmem>>, vector<1x96xf32>
      %14 = vector.broadcast %13 : vector<1x96xf32> to vector<16x96xf32>
      %15 = arith.addf %12, %14 : vector<16x96xf32>
      %16 = arith.truncf %15 : vector<16x96xf32> to vector<16x96xbf16>
      %c0_14 = arith.constant 0 : index
      %c0_15 = arith.constant 0 : index
      %17 = vector.load %arg6[%c0_14, %c0_15] : memref<16x96xbf16, #tpu.memory_space<vmem>>, vector<16x96xbf16>
      tpu.vector_store %arg6[%c0_14, %c0_15], %16 {strides = array<i32>} : memref<16x96xbf16, #tpu.memory_space<vmem>>, vector<16x96xbf16>,
    } else {
    }
    return
  }
  func.func @transform_0(%arg0: i32, %arg1: i32, %arg2: i32) -> (i32, i32) {
    %c0_i32 = arith.constant 0 : i32
    return %arg0, %arg2 : i32, i32
  }
  func.func @transform_1(%arg0: i32, %arg1: i32, %arg2: i32) -> (i32, i32) {
    %c0_i32 = arith.constant 0 : i32
    return %arg2, %arg1 : i32, i32
  }
  func.func @transform_2(%arg0: i32, %arg1: i32, %arg2: i32) -> (i32, i32) {
    %c0_i32 = arith.constant 0 : i32
    %c0_i32_0 = arith.constant 0 : i32
    return %c0_i32, %arg1 : i32, i32
  }
  func.func @transform_3(%arg0: i32, %arg1: i32, %arg2: i32) -> (i32, i32) {
    %c0_i32 = arith.constant 0 : i32
    return %arg0, %arg1 : i32, i32
  }
}

module attributes {stable_mosaic.version = 11 : i64} {
  func.func @_flash_attn_kernel(%arg0: i32, %arg1: i32, %arg2: i32, %arg3: i32, %arg4: memref<1x1x1x8x8xbf16, #tpu.memory_space<vmem>>, %arg5: memref<1x1x1x8x8xbf16, #tpu.memory_space<vmem>>, %arg6: memref<1x1x1x8x8xbf16, #tpu.memory_space<vmem>>, %arg7: memref<1x1x8x8xbf16, #tpu.memory_space<vmem>>, %arg8: memref<8x1xf32, #tpu.memory_space<vmem>>, %arg9: memref<8x1xf32, #tpu.memory_space<vmem>>, %arg10: memref<8x8xf32, #tpu.memory_space<vmem>>) attributes {dimension_semantics = [#tpu.dimension_semantics<parallel>, #tpu.dimension_semantics<parallel>, #tpu.dimension_semantics<parallel>, #tpu.dimension_semantics<arbitrary>], iteration_bounds = array<i64: 2, 4, 1, 1>, scalar_prefetch = 0 : i64, scratch_operands = 3 : i64, tpu.core_type = #tpu.core_type<tc>, window_params = [{transform_indices = @transform_0, window_bounds = array<i64: 1, 1, 1, 8, 8>}, {transform_indices = @transform_1, window_bounds = array<i64: 1, 1, 1, 8, 8>}, {transform_indices = @transform_2, window_bounds = array<i64: 1, 1, 1, 8, 8>}, {transform_indices = @transform_3, window_bounds = array<i64: 1, 1, 8, 8>}]} {
    %c0_i32 = arith.constant 0 : i32
    %0 = arith.cmpi eq, %arg3, %c0_i32 : i32
    %1 = arith.extui %0 : i1 to i32
    %c0_i32_0 = arith.constant 0 : i32
    %2 = arith.cmpi ne, %1, %c0_i32_0 : i32
    scf.if %2 {
      %cst_32 = arith.constant 0xFF800000 : f32
      %36 = vector.broadcast %cst_32 : f32 to vector<8x1xf32>
      %c0_33 = arith.constant 0 : index
      %c0_34 = arith.constant 0 : index
      %37 = vector.load %arg8[%c0_33, %c0_34] : memref<8x1xf32, #tpu.memory_space<vmem>>, vector<8x1xf32>
      tpu.vector_store %arg8[%c0_33, %c0_34], %36 {strides = array<i32>} : memref<8x1xf32, #tpu.memory_space<vmem>>, vector<8x1xf32>,
      %cst_35 = arith.constant 0.000000e+00 : f32
      %38 = vector.broadcast %cst_35 : f32 to vector<8x1xf32>
      %c0_36 = arith.constant 0 : index
      %c0_37 = arith.constant 0 : index
      %39 = vector.load %arg9[%c0_36, %c0_37] : memref<8x1xf32, #tpu.memory_space<vmem>>, vector<8x1xf32>
      tpu.vector_store %arg9[%c0_36, %c0_37], %38 {strides = array<i32>} : memref<8x1xf32, #tpu.memory_space<vmem>>, vector<8x1xf32>,
      %cst_38 = arith.constant 0.000000e+00 : f32
      %40 = vector.broadcast %cst_38 : f32 to vector<8x8xf32>
      %c0_39 = arith.constant 0 : index
      %c0_40 = arith.constant 0 : index
      %41 = vector.load %arg10[%c0_39, %c0_40] : memref<8x8xf32, #tpu.memory_space<vmem>>, vector<8x8xf32>
      tpu.vector_store %arg10[%c0_39, %c0_40], %40 {strides = array<i32>} : memref<8x8xf32, #tpu.memory_space<vmem>>, vector<8x8xf32>,
    } else {
    }
    %c0 = arith.constant 0 : index
    %c0_1 = arith.constant 0 : index
    %c0_2 = arith.constant 0 : index
    %c0_3 = arith.constant 0 : index
    %c0_4 = arith.constant 0 : index
    %3 = vector.load %arg4[%c0, %c0_1, %c0_2, %c0_3, %c0_4] : memref<1x1x1x8x8xbf16, #tpu.memory_space<vmem>>, vector<1x1x1x8x8xbf16>
    %4 = vector.shape_cast %3 : vector<1x1x1x8x8xbf16> to vector<8x8xbf16>
    %c0_5 = arith.constant 0 : index
    %c0_6 = arith.constant 0 : index
    %c0_7 = arith.constant 0 : index
    %c0_8 = arith.constant 0 : index
    %c0_9 = arith.constant 0 : index
    %5 = vector.load %arg5[%c0_5, %c0_6, %c0_7, %c0_8, %c0_9] : memref<1x1x1x8x8xbf16, #tpu.memory_space<vmem>>, vector<1x1x1x8x8xbf16>
    %6 = vector.shape_cast %5 : vector<1x1x1x8x8xbf16> to vector<8x8xbf16>
    %c0_10 = arith.constant 0 : index
    %c0_11 = arith.constant 0 : index
    %c0_12 = arith.constant 0 : index
    %c0_13 = arith.constant 0 : index
    %c0_14 = arith.constant 0 : index
    %7 = vector.load %arg6[%c0_10, %c0_11, %c0_12, %c0_13, %c0_14] : memref<1x1x1x8x8xbf16, #tpu.memory_space<vmem>>, vector<1x1x1x8x8xbf16>
    %8 = vector.shape_cast %7 : vector<1x1x1x8x8xbf16> to vector<8x8xbf16>
    %cst = arith.constant dense<0.000000e+00> : vector<8x8xf32>
    %9 = tpu.matmul %4, %6, %cst {dimension_numbers = #tpu.dot_dimension_numbers<[1], [1], [0], [0], [0, 0, 1, 0], [], []>} : vector<8x8xbf16>, vector<8x8xbf16>, vector<8x8xf32> -> vector<8x8xf32>
    %c0_15 = arith.constant 0 : index
    %c0_16 = arith.constant 0 : index
    %10 = vector.load %arg8[%c0_15, %c0_16] : memref<8x1xf32, #tpu.memory_space<vmem>>, vector<8x1xf32>
    %cst_17 = arith.constant dense<0xFF800000> : vector<8xf32>
    %11 = vector.multi_reduction <maximumf>, %9, %cst_17 [1] : vector<8x8xf32> to vector<8xf32>
    %12 = vector.shape_cast %11 : vector<8xf32> to vector<8x1xf32>
    %13 = arith.maximumf %10, %12 : vector<8x1xf32>
    %14 = arith.subf %10, %13 : vector<8x1xf32>
    %15 = math.exp %14 : vector<8x1xf32>
    %16 = vector.broadcast %13 : vector<8x1xf32> to vector<8x8xf32>
    %17 = arith.subf %9, %16 : vector<8x8xf32>
    %18 = math.exp %17 : vector<8x8xf32>
    %c0_18 = arith.constant 0 : index
    %c0_19 = arith.constant 0 : index
    %19 = vector.load %arg9[%c0_18, %c0_19] : memref<8x1xf32, #tpu.memory_space<vmem>>, vector<8x1xf32>
    %20 = arith.mulf %15, %19 : vector<8x1xf32>
    %cst_20 = arith.constant dense<0.000000e+00> : vector<8xf32>
    %21 = vector.multi_reduction <add>, %18, %cst_20 [1] : vector<8x8xf32> to vector<8xf32>
    %22 = vector.shape_cast %21 : vector<8xf32> to vector<8x1xf32>
    %23 = arith.addf %20, %22 : vector<8x1xf32>
    %c0_21 = arith.constant 0 : index
    %c0_22 = arith.constant 0 : index
    %24 = vector.load %arg9[%c0_21, %c0_22] : memref<8x1xf32, #tpu.memory_space<vmem>>, vector<8x1xf32>
    tpu.vector_store %arg9[%c0_21, %c0_22], %23 {strides = array<i32>} : memref<8x1xf32, #tpu.memory_space<vmem>>, vector<8x1xf32>,
    %c0_23 = arith.constant 0 : index
    %c0_24 = arith.constant 0 : index
    %25 = vector.load %arg10[%c0_23, %c0_24] : memref<8x8xf32, #tpu.memory_space<vmem>>, vector<8x8xf32>
    %26 = vector.broadcast %15 : vector<8x1xf32> to vector<8x8xf32>
    %27 = arith.mulf %26, %25 : vector<8x8xf32>
    %28 = arith.truncf %18 : vector<8x8xf32> to vector<8x8xbf16>
    %cst_25 = arith.constant dense<0.000000e+00> : vector<8x8xf32>
    %29 = tpu.matmul %28, %8, %cst_25 {dimension_numbers = #tpu.dot_dimension_numbers<[1], [0], [0], [1], [0, 0, 1, 1], [], []>} : vector<8x8xbf16>, vector<8x8xbf16>, vector<8x8xf32> -> vector<8x8xf32>
    %30 = arith.addf %27, %29 : vector<8x8xf32>
    %c0_26 = arith.constant 0 : index
    %c0_27 = arith.constant 0 : index
    %31 = vector.load %arg10[%c0_26, %c0_27] : memref<8x8xf32, #tpu.memory_space<vmem>>, vector<8x8xf32>
    tpu.vector_store %arg10[%c0_26, %c0_27], %30 {strides = array<i32>} : memref<8x8xf32, #tpu.memory_space<vmem>>, vector<8x8xf32>,
    %c0_28 = arith.constant 0 : index
    %c0_29 = arith.constant 0 : index
    %32 = vector.load %arg8[%c0_28, %c0_29] : memref<8x1xf32, #tpu.memory_space<vmem>>, vector<8x1xf32>
    tpu.vector_store %arg8[%c0_28, %c0_29], %13 {strides = array<i32>} : memref<8x1xf32, #tpu.memory_space<vmem>>, vector<8x1xf32>,
    %c0_i32_30 = arith.constant 0 : i32
    %33 = arith.cmpi eq, %arg3, %c0_i32_30 : i32
    %34 = arith.extui %33 : i1 to i32
    %c0_i32_31 = arith.constant 0 : i32
    %35 = arith.cmpi ne, %34, %c0_i32_31 : i32
    scf.if %35 {
      %c0_32 = arith.constant 0 : index
      %c0_33 = arith.constant 0 : index
      %36 = vector.load %arg9[%c0_32, %c0_33] : memref<8x1xf32, #tpu.memory_space<vmem>>, vector<8x1xf32>
      %37 = tpu.reciprocal %36 : vector<8x1xf32> -> vector<8x1xf32>
      %c0_34 = arith.constant 0 : index
      %c0_35 = arith.constant 0 : index
      %38 = vector.load %arg10[%c0_34, %c0_35] : memref<8x8xf32, #tpu.memory_space<vmem>>, vector<8x8xf32>
      %39 = vector.broadcast %37 : vector<8x1xf32> to vector<8x8xf32>
      %40 = arith.mulf %38, %39 : vector<8x8xf32>
      %41 = arith.truncf %40 : vector<8x8xf32> to vector<8x8xbf16>
      %c0_36 = arith.constant 0 : index
      %c0_37 = arith.constant 0 : index
      %c0_38 = arith.constant 0 : index
      %c0_39 = arith.constant 0 : index
      %42 = vector.load %arg7[%c0_36, %c0_37, %c0_38, %c0_39] : memref<1x1x8x8xbf16, #tpu.memory_space<vmem>>, vector<1x1x8x8xbf16>
      %43 = vector.shape_cast %42 : vector<1x1x8x8xbf16> to vector<8x8xbf16>
      %44 = vector.shape_cast %41 : vector<8x8xbf16> to vector<1x1x8x8xbf16>
      tpu.vector_store %arg7[%c0_36, %c0_37, %c0_38, %c0_39], %44 {strides = array<i32>} : memref<1x1x8x8xbf16, #tpu.memory_space<vmem>>, vector<1x1x8x8xbf16>,
    } else {
    }
    return
  }
  func.func @transform_0(%arg0: i32, %arg1: i32, %arg2: i32, %arg3: i32) -> (i32, i32, i32, i32, i32) {
    %c0_i32 = arith.constant 0 : i32
    %c0_i32_0 = arith.constant 0 : i32
    %c0_i32_1 = arith.constant 0 : i32
    return %c0_i32, %arg1, %arg0, %arg2, %c0_i32_0 : i32, i32, i32, i32, i32
  }
  func.func @transform_1(%arg0: i32, %arg1: i32, %arg2: i32, %arg3: i32) -> (i32, i32, i32, i32, i32) {
    %c1_i32 = arith.constant 1 : i32
    %c0_i32 = arith.constant 0 : i32
    %c0_i32_0 = arith.constant 0 : i32
    return %c1_i32, %arg1, %arg0, %arg3, %c0_i32 : i32, i32, i32, i32, i32
  }
  func.func @transform_2(%arg0: i32, %arg1: i32, %arg2: i32, %arg3: i32) -> (i32, i32, i32, i32, i32) {
    %c2_i32 = arith.constant 2 : i32
    %c0_i32 = arith.constant 0 : i32
    %c0_i32_0 = arith.constant 0 : i32
    return %c2_i32, %arg1, %arg0, %arg3, %c0_i32 : i32, i32, i32, i32, i32
  }
  func.func @transform_3(%arg0: i32, %arg1: i32, %arg2: i32, %arg3: i32) -> (i32, i32, i32, i32) {
    %c0_i32 = arith.constant 0 : i32
    %c0_i32_0 = arith.constant 0 : i32
    return %arg0, %arg1, %arg2, %c0_i32 : i32, i32, i32, i32
  }
}

module attributes {stable_mosaic.version = 11 : i64} {
  func.func @_linear_kernel(%arg0: i32, %arg1: i32, %arg2: i32, %arg3: memref<16x32xbf16, #tpu.memory_space<vmem>>, %arg4: memref<32x32xbf16, #tpu.memory_space<vmem>>, %arg5: memref<1x32xf32, #tpu.memory_space<vmem>>, %arg6: memref<16x32xf32, #tpu.memory_space<vmem>>, %arg7: memref<16x32xf32, #tpu.memory_space<vmem>>) attributes {dimension_semantics = [#tpu.dimension_semantics<parallel>, #tpu.dimension_semantics<parallel>, #tpu.dimension_semantics<arbitrary>], iteration_bounds = array<i64: 1, 1, 1>, scalar_prefetch = 0 : i64, scratch_operands = 1 : i64, tpu.core_type = #tpu.core_type<tc>, window_params = [{transform_indices = @transform_0, window_bounds = array<i64: 16, 32>}, {transform_indices = @transform_1, window_bounds = array<i64: 32, 32>}, {transform_indices = @transform_2, window_bounds = array<i64: 1, 32>}, {transform_indices = @transform_3, window_bounds = array<i64: 16, 32>}]} {
    %c0_i32 = arith.constant 0 : i32
    %0 = arith.cmpi eq, %arg2, %c0_i32 : i32
    %1 = arith.extui %0 : i1 to i32
    %c0_i32_0 = arith.constant 0 : i32
    %2 = arith.cmpi ne, %1, %c0_i32_0 : i32
    scf.if %2 {
      %cst_10 = arith.constant 0.000000e+00 : f32
      %12 = vector.broadcast %cst_10 : f32 to vector<16x32xf32>
      %c0_11 = arith.constant 0 : index
      %c0_12 = arith.constant 0 : index
      %13 = vector.load %arg7[%c0_11, %c0_12] : memref<16x32xf32, #tpu.memory_space<vmem>>, vector<16x32xf32>
      tpu.vector_store %arg7[%c0_11, %c0_12], %12 {strides = array<i32>} : memref<16x32xf32, #tpu.memory_space<vmem>>, vector<16x32xf32>,
    } else {
    }
    %c0 = arith.constant 0 : index
    %c0_1 = arith.constant 0 : index
    %3 = vector.load %arg7[%c0, %c0_1] : memref<16x32xf32, #tpu.memory_space<vmem>>, vector<16x32xf32>
    %c0_2 = arith.constant 0 : index
    %c0_3 = arith.constant 0 : index
    %4 = vector.load %arg3[%c0_2, %c0_3] : memref<16x32xbf16, #tpu.memory_space<vmem>>, vector<16x32xbf16>
    %c0_4 = arith.constant 0 : index
    %c0_5 = arith.constant 0 : index
    %5 = vector.load %arg4[%c0_4, %c0_5] : memref<32x32xbf16, #tpu.memory_space<vmem>>, vector<32x32xbf16>
    %cst = arith.constant dense<0.000000e+00> : vector<16x32xf32>
    %6 = tpu.matmul %4, %5, %cst {dimension_numbers = #tpu.dot_dimension_numbers<[1], [0], [0], [1], [0, 0, 1, 1], [], []>} : vector<16x32xbf16>, vector<32x32xbf16>, vector<16x32xf32> -> vector<16x32xf32>
    %7 = arith.addf %3, %6 : vector<16x32xf32>
    %c0_6 = arith.constant 0 : index
    %c0_7 = arith.constant 0 : index
    %8 = vector.load %arg7[%c0_6, %c0_7] : memref<16x32xf32, #tpu.memory_space<vmem>>, vector<16x32xf32>
    tpu.vector_store %arg7[%c0_6, %c0_7], %7 {strides = array<i32>} : memref<16x32xf32, #tpu.memory_space<vmem>>, vector<16x32xf32>,
    %c0_i32_8 = arith.constant 0 : i32
    %9 = arith.cmpi eq, %arg2, %c0_i32_8 : i32
    %10 = arith.extui %9 : i1 to i32
    %c0_i32_9 = arith.constant 0 : i32
    %11 = arith.cmpi ne, %10, %c0_i32_9 : i32
    scf.if %11 {
      %c0_10 = arith.constant 0 : index
      %c0_11 = arith.constant 0 : index
      %12 = vector.load %arg7[%c0_10, %c0_11] : memref<16x32xf32, #tpu.memory_space<vmem>>, vector<16x32xf32>
      %c0_12 = arith.constant 0 : index
      %c0_13 = arith.constant 0 : index
      %13 = vector.load %arg5[%c0_12, %c0_13] : memref<1x32xf32, #tpu.memory_space<vmem>>, vector<1x32xf32>
      %14 = vector.broadcast %13 : vector<1x32xf32> to vector<16x32xf32>
      %15 = arith.addf %12, %14 : vector<16x32xf32>
      %c0_14 = arith.constant 0 : index
      %c0_15 = arith.constant 0 : index
      %16 = vector.load %arg6[%c0_14, %c0_15] : memref<16x32xf32, #tpu.memory_space<vmem>>, vector<16x32xf32>
      tpu.vector_store %arg6[%c0_14, %c0_15], %15 {strides = array<i32>} : memref<16x32xf32, #tpu.memory_space<vmem>>, vector<16x32xf32>,
    } else {
    }
    return
  }
  func.func @transform_0(%arg0: i32, %arg1: i32, %arg2: i32) -> (i32, i32) {
    %c0_i32 = arith.constant 0 : i32
    return %arg0, %arg2 : i32, i32
  }
  func.func @transform_1(%arg0: i32, %arg1: i32, %arg2: i32) -> (i32, i32) {
    %c0_i32 = arith.constant 0 : i32
    return %arg2, %arg1 : i32, i32
  }
  func.func @transform_2(%arg0: i32, %arg1: i32, %arg2: i32) -> (i32, i32) {
    %c0_i32 = arith.constant 0 : i32
    %c0_i32_0 = arith.constant 0 : i32
    return %c0_i32, %arg1 : i32, i32
  }
  func.func @transform_3(%arg0: i32, %arg1: i32, %arg2: i32) -> (i32, i32) {
    %c0_i32 = arith.constant 0 : i32
    return %arg0, %arg1 : i32, i32
  }
}

</mosaic_0001>

<llo_original>
// kernel: _lambda_.3
$region0: #{_lambda_.3}
  #allocation0 [shape = 'u32[]', space=smem, size = 0x4, offset = 0x4, fixed_abs, tag = 'smem constant byte address 0x4 - core index']
  #allocation1 [shape = 'u32[144,128]{1,0:T(1,128)}', space=vmem, size = 0x12000, scoped, tag = 'internal scratch']
  #allocation2 [shape = 'f32[16,96]{1,0:T(8,128)}', space=vmem, size = 0x2000, scoped, tag = 'scratch operand']
  %s0 = inlined_call_operand.vmem [shape: bf16[16,32], index: 0, kind: input, shape index: {}]
  %s1 = inlined_call_operand.vmem [shape: bf16[32,96], index: 1, kind: input, shape index: {}]
  %s2 = inlined_call_operand.vmem [shape: f32[1,96], index: 2, kind: input, shape index: {}]
  %s3 = inlined_call_operand.vmem [shape: bf16[16,96], index: 3, kind: output, shape index: {}]
  %s4 = sld [smem:[#allocation0]]
  $region30: #{_lambda_.3} parent=0
    _
  %s6 = ssub.s32 1, %s4
  %s7 = scalar_select 0, %s6, %s4
  // Predicated region
  $region2: #{_lambda_.3} parent=0 // pred_check
    _
  $region3: #{_lambda_.3} parent=0 // pred_check_branch
    %9 = sbr.rel (0) target = $region5
  $region4: #{_lambda_.3} parent=0 // pred_region
    _
  $region5: #{_lambda_.3} parent=0 // pred_fallthru
    _
  // Predicated region
  $region6: #{_lambda_.3} parent=0 // pred_check
    _
  $region7: #{_lambda_.3} parent=0 // pred_check_branch
    %11 = sbr.rel (0) target = $region9
  $region8: #{_lambda_.3} parent=0 // pred_region
    _
  $region9: #{_lambda_.3} parent=0 // pred_fallthru
    _
  // Predicated region
  $region10: #{_lambda_.3} parent=0 // pred_check
    _
  $region11: #{_lambda_.3} parent=0 // pred_check_branch
    %13 = sbr.rel (0) target = $region13
  $region12: #{_lambda_.3} parent=0 // pred_region
    _
  $region13: #{_lambda_.3} parent=0 // pred_fallthru
    _
  %p15 = scmp.eq.s32.totalorder 0, 0
  // Predicated region
  $region14: #{_lambda_.3} parent=0 // pred_check
    %p16 = pneg %p15
  $region15: #{_lambda_.3} parent=0 // pred_check_branch
    %18 = sbr.rel (%p16) target = $region17
  $region16: #{_lambda_.3} parent=0 // pred_region
    %vm19 = vcmask 785408
    %20 = vst.msk [vmem:[#allocation2] sm:$0xff] %vm19, 0.0
    %21 = vst.msk [vmem:[#allocation2 + $0x8] sm:$0xff] %vm19, 0.0
  $region17: #{_lambda_.3} parent=0 // pred_fallthru
    _
  %v22 = vld [vmem:[#allocation2] sm:$0xff]
  %v23 = vld [vmem:[#allocation2 + $0x8] sm:$0xff]
  %v24 = vld [vmem:[%s0] sm:$0xf]
  %v25 = vld [vmem:[%s0 + $0x4] sm:$0xf]
  %v26 = vld [vmem:[%s1] sm:$0xf]
  %v27 = vld [vmem:[%s1 + $0x4] sm:$0xf]
  %v28 = vld [vmem:[%s1 + $0x8] sm:$0xf]
  %v29 = vld [vmem:[%s1 + $0xc] sm:$0xf]
  %v32 = vunpack.c.l.b16 %v24
  %v33 = vunpack.c.l.b16 %v25
  %v34 = vpack.c.b16 %v33, %v32
  %v39 = vunpack.c.l.b16 %v26
  %v40 = vunpack.c.l.b16 %v27
  %v41 = vunpack.c.l.b16 %v28
  %v42 = vunpack.c.l.b16 %v29
  %v43 = vpack.c.b16 %v40, %v39
  %v44 = vpack.c.b16 %v42, %v41
  %vm47 = vcmask 261120
  %v49 = vsel %vm47, %v34, 0
  %51 = vmatprep.subr.bf16.mxu0 0
  %52 = vmatpush1.bf16.msra.mxu0 %v43
  %53 = vmatprep.subr.bf16.mxu0 0
  %54 = vmatpush1.bf16.msra.mxu0 %v44
  %55 = vmatprep.subr.bf16.mxu0 0
  %56 = vmatpush1.bf16.msra.mxu0 0
  %57 = vmatprep.subr.bf16.mxu0 0
  %58 = vmatpush1.bf16.msra.mxu0 0
  %59 = vmatprep.subr.bf16.mxu0 0
  %60 = vmatpush1.bf16.msra.mxu0 0
  %61 = vmatprep.subr.bf16.mxu0 0
  %62 = vmatpush1.bf16.msra.mxu0 0
  %63 = vmatprep.subr.bf16.mxu0 0
  %64 = vmatpush1.bf16.msra.mxu0 0
  %65 = vmatprep.subr.bf16.mxu0 0
  %66 = vmatpush1.bf16.msra.mxu0 0
  %67 = vmatprep.subr.bf16.mxu0 0
  %68 = vmatpush1.bf16.msra.mxu0 0
  %69 = vmatprep.subr.bf16.mxu0 0
  %70 = vmatpush1.bf16.msra.mxu0 0
  %71 = vmatprep.subr.bf16.mxu0 0
  %72 = vmatpush1.bf16.msra.mxu0 0
  %73 = vmatprep.subr.bf16.mxu0 0
  %74 = vmatpush1.bf16.msra.mxu0 0
  %75 = vmatprep.subr.bf16.mxu0 0
  %76 = vmatpush1.bf16.msra.mxu0 0
  %77 = vmatprep.subr.bf16.mxu0 0
  %78 = vmatpush1.bf16.msra.mxu0 0
  %79 = vmatprep.subr.bf16.mxu0 0
  %80 = vmatpush1.bf16.msra.mxu0 0
  %81 = vmatprep.subr.bf16.mxu0 0
  %82 = vmatpush1.bf16.msra.mxu0 0
  %83 = vmatprep.mubr.bf16.mxu0 0
  %84 = vmatmul.mubr.bf16.gmra.mrb[0].mxu0 %v49
  %v85 = vpop.f32.mrb[0].mxu0
  %v86 = vadd.f32 0.0, %v85
  %v87 = vpop.f32.mrb[0].mxu0
  %v88 = vpop.f32.mrb[0].mxu0
  %v89 = vadd.f32 0.0, %v88
  %v90 = vpop.f32.mrb[0].mxu0
  %91 = vdwg.mxu0
  %v92 = vadd.f32 %v22, %v86
  %v93 = vadd.f32 %v23, %v89
  %vm94 = vcmask 785408
  %95 = vst.msk [vmem:[#allocation2] sm:$0xff] %vm94, %v92
  %96 = vst.msk [vmem:[#allocation2 + $0x8] sm:$0xff] %vm94, %v93
  // Predicated region
  $region18: #{_lambda_.3} parent=0 // pred_check
    %p97 = pneg %p15
  $region19: #{_lambda_.3} parent=0 // pred_check_branch
    %99 = sbr.rel (%p97) target = $region21
  $region20: #{_lambda_.3} parent=0 // pred_region
    %v100 = vld [vmem:[#allocation2] sm:$0xff]
    %v101 = vld [vmem:[#allocation2 + $0x8] sm:$0xff]
    %v102 = vld [vmem:[%s2] sm:$0x1]
    %v104 = vlaneseq
    %v105 = vshrl.u32 %v104, 7
    %v106 = vsub.s32 0, %v105
    %v107 = vrot.slane %v102, %v106
    %v109 = vadd.f32 %v100, %v107
    %v110 = vadd.f32 %v101, %v107
    %v111 = vpack.c.bf16 %v110, %v109
    %v113 = vunpack.c.l.b16 %v111
    %v114 = vunpack.c.h.b16 %v111
    %v115 = vpack.c.b16 %v113, %v113
    %v116 = vpack.c.b16 %v114, %v114
    %vm119 = vcmask 781312
    %120 = vst.msk [vmem:[%s3] sm:$0xf] %vm119, %v115
    %121 = vst.msk [vmem:[%s3 + $0x4] sm:$0xf] %vm119, %v116
  $region21: #{_lambda_.3} parent=0 // pred_fallthru
    _
  // Predicated region
  $region22: #{_lambda_.3} parent=0 // pred_check
    _
  $region23: #{_lambda_.3} parent=0 // pred_check_branch
    %123 = sbr.rel (0) target = $region25
  $region24: #{_lambda_.3} parent=0 // pred_region
    _
  $region25: #{_lambda_.3} parent=0 // pred_fallthru
    _
  // Predicated region
  $region26: #{_lambda_.3} parent=0 // pred_check
    _
  $region27: #{_lambda_.3} parent=0 // pred_check_branch
    %125 = sbr.rel (0) target = $region29
  $region28: #{_lambda_.3} parent=0 // pred_region
    _
  $region29: #{_lambda_.3} parent=0 // pred_fallthru
    _

// kernel: _lambda_.5
$region0: #{_lambda_.5}
  #allocation0 [shape = 'u32[]', space=smem, size = 0x4, offset = 0x4, fixed_abs, tag = 'smem constant byte address 0x4 - core index']
  #allocation1 [shape = 'u32[144,128]{1,0:T(1,128)}', space=vmem, size = 0x12000, scoped, tag = 'internal scratch']
  #allocation2 [shape = 'f32[16,32]{1,0:T(8,128)}', space=vmem, size = 0x2000, scoped, tag = 'scratch operand']
  %s0 = inlined_call_operand.vmem [shape: bf16[16,32], index: 0, kind: input, shape index: {}]
  %s1 = inlined_call_operand.vmem [shape: bf16[32,32], index: 1, kind: input, shape index: {}]
  %s2 = inlined_call_operand.vmem [shape: f32[1,32], index: 2, kind: input, shape index: {}]
  %s3 = inlined_call_operand.hbm [shape: f32[16,32], index: 3, kind: output, shape index: {}]
  %s4 = sld [smem:[#allocation0]]
  $region30: #{_lambda_.5} parent=0
    _
  %s6 = ssub.s32 1, %s4
  %s7 = scalar_select 0, %s6, %s4
  $region1: #{_lambda_.5} parent=0
    #allocation3 [shape = 'u8[8192]{0}', space=vmem, size = 0x2000, scoped, tag = 'output window, operand 0, single buffered']
    #allocation4 [shape = 's32[1]{0}', space=sflag, size = 0x4, scoped, tag = 'scoped memory for _lambda_.5']
    %8 = vsyncpa [#allocation4], 0
    // Predicated region
    $region2: #{_lambda_.5} parent=1 // pred_check
      _
    $region3: #{_lambda_.5} parent=1 // pred_check_branch
      %10 = sbr.rel (0) target = $region5
    $region4: #{_lambda_.5} parent=1 // pred_region
      _
    $region5: #{_lambda_.5} parent=1 // pred_fallthru
      _
    // Predicated region
    $region6: #{_lambda_.5} parent=1 // pred_check
      _
    $region7: #{_lambda_.5} parent=1 // pred_check_branch
      %12 = sbr.rel (0) target = $region9
    $region8: #{_lambda_.5} parent=1 // pred_region
      _
    $region9: #{_lambda_.5} parent=1 // pred_fallthru
      _
    // Predicated region
    $region10: #{_lambda_.5} parent=1 // pred_check
      _
    $region11: #{_lambda_.5} parent=1 // pred_check_branch
      %14 = sbr.rel (0) target = $region13
    $region12: #{_lambda_.5} parent=1 // pred_region
      _
    $region13: #{_lambda_.5} parent=1 // pred_fallthru
      _
    %p16 = scmp.eq.s32.totalorder 0, 0
    // Predicated region
    $region14: #{_lambda_.5} parent=1 // pred_check
      %p17 = pneg %p16
    $region15: #{_lambda_.5} parent=1 // pred_check_branch
      %19 = sbr.rel (%p17) target = $region17
    $region16: #{_lambda_.5} parent=1 // pred_region
      %vm20 = vcmask 261120
      %21 = vst.msk [vmem:[#allocation2] sm:$0xff] %vm20, 0.0
      %22 = vst.msk [vmem:[#allocation2 + $0x8] sm:$0xff] %vm20, 0.0
    $region17: #{_lambda_.5} parent=1 // pred_fallthru
      _
    %v23 = vld [vmem:[#allocation2] sm:$0xff]
    %v24 = vld [vmem:[#allocation2 + $0x8] sm:$0xff]
    %v25 = vld [vmem:[%s0] sm:$0xf]
    %v26 = vld [vmem:[%s0 + $0x4] sm:$0xf]
    %v27 = vld [vmem:[%s1] sm:$0xf]
    %v28 = vld [vmem:[%s1 + $0x4] sm:$0xf]
    %v29 = vld [vmem:[%s1 + $0x8] sm:$0xf]
    %v30 = vld [vmem:[%s1 + $0xc] sm:$0xf]
    %v33 = vunpack.c.l.b16 %v25
    %v34 = vunpack.c.l.b16 %v26
    %v35 = vpack.c.b16 %v34, %v33
    %v40 = vunpack.c.l.b16 %v27
    %v41 = vunpack.c.l.b16 %v28
    %v42 = vunpack.c.l.b16 %v29
    %v43 = vunpack.c.l.b16 %v30
    %v44 = vpack.c.b16 %v41, %v40
    %v45 = vpack.c.b16 %v43, %v42
    %vm48 = vcmask 261120
    %v50 = vsel %vm48, %v35, 0
    %52 = vmatprep.subr.bf16.mxu0 0
    %53 = vmatpush1.bf16.msra.mxu0 %v44
    %54 = vmatprep.subr.bf16.mxu0 0
    %55 = vmatpush1.bf16.msra.mxu0 %v45
    %56 = vmatprep.subr.bf16.mxu0 0
    %57 = vmatpush1.bf16.msra.mxu0 0
    %58 = vmatprep.subr.bf16.mxu0 0
    %59 = vmatpush1.bf16.msra.mxu0 0
    %60 = vmatprep.subr.bf16.mxu0 0
    %61 = vmatpush1.bf16.msra.mxu0 0
    %62 = vmatprep.subr.bf16.mxu0 0
    %63 = vmatpush1.bf16.msra.mxu0 0
    %64 = vmatprep.subr.bf16.mxu0 0
    %65 = vmatpush1.bf16.msra.mxu0 0
    %66 = vmatprep.subr.bf16.mxu0 0
    %67 = vmatpush1.bf16.msra.mxu0 0
    %68 = vmatprep.subr.bf16.mxu0 0
    %69 = vmatpush1.bf16.msra.mxu0 0
    %70 = vmatprep.subr.bf16.mxu0 0
    %71 = vmatpush1.bf16.msra.mxu0 0
    %72 = vmatprep.subr.bf16.mxu0 0
    %73 = vmatpush1.bf16.msra.mxu0 0
    %74 = vmatprep.subr.bf16.mxu0 0
    %75 = vmatpush1.bf16.msra.mxu0 0
    %76 = vmatprep.subr.bf16.mxu0 0
    %77 = vmatpush1.bf16.msra.mxu0 0
    %78 = vmatprep.subr.bf16.mxu0 0
    %79 = vmatpush1.bf16.msra.mxu0 0
    %80 = vmatprep.subr.bf16.mxu0 0
    %81 = vmatpush1.bf16.msra.mxu0 0
    %82 = vmatprep.subr.bf16.mxu0 0
    %83 = vmatpush1.bf16.msra.mxu0 0
    %84 = vmatprep.mubr.bf16.mxu0 0
    %85 = vmatmul.mubr.bf16.gmra.mrb[0].mxu0 %v50
    %v86 = vpop.f32.mrb[0].mxu0
    %v87 = vadd.f32 0.0, %v86
    %v88 = vpop.f32.mrb[0].mxu0
    %v89 = vpop.f32.mrb[0].mxu0
    %v90 = vadd.f32 0.0, %v89
    %v91 = vpop.f32.mrb[0].mxu0
    %92 = vdwg.mxu0
    %v93 = vadd.f32 %v23, %v87
    %v94 = vadd.f32 %v24, %v90
    %95 = vst.msk [vmem:[#allocation2] sm:$0xff] %vm48, %v93
    %96 = vst.msk [vmem:[#allocation2 + $0x8] sm:$0xff] %vm48, %v94
    // Predicated region
    $region18: #{_lambda_.5} parent=1 // pred_check
      %p97 = pneg %p16
    $region19: #{_lambda_.5} parent=1 // pred_check_branch
      %99 = sbr.rel (%p97) target = $region21
    $region20: #{_lambda_.5} parent=1 // pred_region
      %v100 = vld [vmem:[#allocation2] sm:$0xff]
      %v101 = vld [vmem:[#allocation2 + $0x8] sm:$0xff]
      %v102 = vld [vmem:[%s2] sm:$0x1]
      %v104 = vlaneseq
      %v105 = vshrl.u32 %v104, 7
      %v106 = vsub.s32 0, %v105
      %v107 = vrot.slane %v102, %v106
      %v109 = vadd.f32 %v100, %v107
      %v110 = vadd.f32 %v101, %v107
      %111 = vst.msk [vmem:[#allocation3] sm:$0xff] %vm48, %v109
      %112 = vst.msk [vmem:[#allocation3 + $0x8] sm:$0xff] %vm48, %v110
    $region21: #{_lambda_.5} parent=1 // pred_fallthru
      _
    // Predicated region
    $region22: #{_lambda_.5} parent=1 // pred_check
      _
    $region23: #{_lambda_.5} parent=1 // pred_check_branch
      %114 = sbr.rel (0) target = $region25
    $region24: #{_lambda_.5} parent=1 // pred_region
      %s116 = ssub.s32 256, 256
      %117 = vsyncadd [#allocation4], %s116
      %s118 = sshll.u32 [#allocation3], 4
      %s119 = int_to_ptr.vmem [resolvable:$true] %s118
      %124 = dma.vmem_to_hbm [thread:$0]  %s119, 256, %s3, [#allocation4], 128, 128, 8
    $region25: #{_lambda_.5} parent=1 // pred_fallthru
      _
    // Predicated region
    $region26: #{_lambda_.5} parent=1 // pred_check
      _
    $region27: #{_lambda_.5} parent=1 // pred_check_branch
      %126 = sbr.rel (0) target = $region29
    $region28: #{_lambda_.5} parent=1 // pred_region
      %127 = dma.done [#allocation4], 256
    $region29: #{_lambda_.5} parent=1 // pred_fallthru
      _
    %128 = vsyncpa [#allocation4], 1

// kernel: _lambda_.4
$region0: #{_lambda_.4}
  #allocation0 [shape = 'u32[]', space=smem, size = 0x4, offset = 0x4, fixed_abs, tag = 'smem constant byte address 0x4 - core index']
  #allocation1 [shape = 'u32[144,128]{1,0:T(1,128)}', space=vmem, size = 0x12000, scoped, tag = 'internal scratch']
  #allocation2 [shape = 'f32[8,1]{1,0:T(8,128)}', space=vmem, size = 0x1000, scoped, tag = 'scratch operand']
  #allocation3 [shape = 'f32[8,1]{1,0:T(8,128)}', space=vmem, size = 0x1000, scoped, tag = 'scratch operand']
  #allocation4 [shape = 'f32[8,8]{1,0:T(8,128)}', space=vmem, size = 0x1000, scoped, tag = 'scratch operand']
  %s0 = inlined_call_operand.vmem [shape: bf16[3,4,2,8,8], index: 0, kind: input, shape index: {}, may-alias: {0,1,2}]
  %s1 = inlined_call_operand.vmem [shape: bf16[3,4,2,8,8], index: 1, kind: input, shape index: {}, may-alias: {0,1,2}]
  %s2 = inlined_call_operand.vmem [shape: bf16[3,4,2,8,8], index: 2, kind: input, shape index: {}, may-alias: {0,1,2}]
  %s3 = inlined_call_operand.vmem [shape: bf16[2,4,8,8], index: 3, kind: output, shape index: {}]
  %s4 = sld [smem:[#allocation0]]
  $region53: #{_lambda_.4} parent=0
    _
  %s6 = ssub.s32 1, %s4
  %s7 = scalar_select 0, %s6, %s4
  loop: start=0, step=1, limit=10
  $region2: #{_lambda_.4} parent=0 // loop_pre_header
    _
  $region3: #{_lambda_.4} parent=0 // loop_header
    %s9 = sphi 0, %s13
    %p10 = scmp.ge.s32.totalorder %s9, 10
    %s16 = sphi 0, %s42
    %s17 = sphi 0, %s38
    %s18 = sphi 0, %s34
    %s19 = sphi 0, %s30
    %s20 = sphi 0, %s16
    %s21 = sphi 0, %s17
    %s22 = sphi 0, %s18
    %s23 = sphi 0, %s19
    %s24 = sphi 0, %s20
    %s25 = sphi 0, %s21
    %s26 = sphi 0, %s22
    %s27 = sphi 0, %s23
    %s49 = sphi 0, %s51
    %s52 = sphi 0, %s49
    %s53 = sphi 0, %s52
    %s69 = sphi 0, %s53
    %s79 = sphi 0, %s81
    %s82 = sphi 0, %s79
    %s83 = sphi 0, %s82
    %s99 = sphi 0, %s83
    %s109 = sphi 0, %s111
    %s112 = sphi 0, %s109
    %s113 = sphi 0, %s112
    %s129 = sphi 0, %s113
    %s139 = sphi 0, %s141
    %s142 = sphi 0, %s139
    %s143 = sphi 0, %s142
    %s159 = sphi 0, %s143
  $region4: #{_lambda_.4} parent=0 // loop_header_branch
    %12 = sbr.rel (%p10) target = $region8
  $region5: #{_lambda_.4} parent=0 // loop_body
    %s14 = ssub.s32 %s9, 1
    %s15 = ssub.s32 %s9, 2
    %s28 = sadd.s32 1, %s19
    %p29 = scmp.ge.s32.totalorder %s28, 1
    %s30 = scalar_select %p29, 0, %s28
    %s31 = sadd.s32 1, %s18
    %s32 = scalar_select %p29, %s31, %s18
    %p33 = scmp.ge.s32.totalorder %s32, 1
    %s34 = scalar_select %p33, 0, %s32
    %s35 = sadd.s32 1, %s17
    %s36 = scalar_select %p33, %s35, %s17
    %p37 = scmp.ge.s32.totalorder %s36, 4
    %s38 = scalar_select %p37, 0, %s36
    %s39 = sadd.s32 1, %s16
    %s40 = scalar_select %p37, %s39, %s16
    %p41 = scmp.ge.s32.totalorder %s40, 2
    %s42 = scalar_select %p41, 0, %s40
    %s43 = ssub.s32 %s17, %s38
    %s44 = ssub.s32 %s16, %s42
    %s45 = sor.u32 %s43, %s44
    %s46 = ssub.s32 %s18, %s34
    %s47 = sor.u32 %s45, %s46
    %p48 = scmp.eq.s32.totalorder %s47, 0
    %s50 = sadd.s32 %s49, 1
    %s51 = scalar_select %p48, %s49, %s50
    %p54 = pneg %p48
    %p55 = scmp.eq.s32.totalorder %s9, 7
    %p56 = por %p54, %p55
    %p57 = scmp.ne.s32.totalorder %s49, %s52
    %p58 = scmp.eq.s32.totalorder %s9, 0
    %p59 = por %p57, %p58
    %p60 = scmp.ne.s32.totalorder %s49, %s52
    %p61 = scmp.eq.s32.totalorder %s14, 7
    %p62 = por %p60, %p61
    %p63 = scmp.ne.s32.totalorder %s52, %s53
    %p64 = scmp.eq.s32.totalorder %s14, 0
    %p65 = por %p63, %p64
    %p66 = scmp.ne.s32.totalorder %s52, %s53
    %p67 = scmp.eq.s32.totalorder %s15, 7
    %p68 = por %p66, %p67
    %p70 = scmp.ne.s32.totalorder %s53, %s69
    %p71 = scmp.eq.s32.totalorder %s15, 0
    %p72 = por %p70, %p71
    %s73 = ssub.s32 %s17, %s38
    %s74 = ssub.s32 %s16, %s42
    %s75 = sor.u32 %s73, %s74
    %s76 = ssub.s32 %s19, %s30
    %s77 = sor.u32 %s75, %s76
    %p78 = scmp.eq.s32.totalorder %s77, 0
    %s80 = sadd.s32 %s79, 1
    %s81 = scalar_select %p78, %s79, %s80
    %p84 = pneg %p78
    %p85 = scmp.eq.s32.totalorder %s9, 7
    %p86 = por %p84, %p85
    %p87 = scmp.ne.s32.totalorder %s79, %s82
    %p88 = scmp.eq.s32.totalorder %s9, 0
    %p89 = por %p87, %p88
    %p90 = scmp.ne.s32.totalorder %s79, %s82
    %p91 = scmp.eq.s32.totalorder %s14, 7
    %p92 = por %p90, %p91
    %p93 = scmp.ne.s32.totalorder %s82, %s83
    %p94 = scmp.eq.s32.totalorder %s14, 0
    %p95 = por %p93, %p94
    %p96 = scmp.ne.s32.totalorder %s82, %s83
    %p97 = scmp.eq.s32.totalorder %s15, 7
    %p98 = por %p96, %p97
    %p100 = scmp.ne.s32.totalorder %s83, %s99
    %p101 = scmp.eq.s32.totalorder %s15, 0
    %p102 = por %p100, %p101
    %s103 = ssub.s32 %s17, %s38
    %s104 = ssub.s32 %s16, %s42
    %s105 = sor.u32 %s103, %s104
    %s106 = ssub.s32 %s19, %s30
    %s107 = sor.u32 %s105, %s106
    %p108 = scmp.eq.s32.totalorder %s107, 0
    %s110 = sadd.s32 %s109, 1
    %s111 = scalar_select %p108, %s109, %s110
    %p114 = pneg %p108
    %p115 = scmp.eq.s32.totalorder %s9, 7
    %p116 = por %p114, %p115
    %p117 = scmp.ne.s32.totalorder %s109, %s112
    %p118 = scmp.eq.s32.totalorder %s9, 0
    %p119 = por %p117, %p118
    %p120 = scmp.ne.s32.totalorder %s109, %s112
    %p121 = scmp.eq.s32.totalorder %s14, 7
    %p122 = por %p120, %p121
    %p123 = scmp.ne.s32.totalorder %s112, %s113
    %p124 = scmp.eq.s32.totalorder %s14, 0
    %p125 = por %p123, %p124
    %p126 = scmp.ne.s32.totalorder %s112, %s113
    %p127 = scmp.eq.s32.totalorder %s15, 7
    %p128 = por %p126, %p127
    %p130 = scmp.ne.s32.totalorder %s113, %s129
    %p131 = scmp.eq.s32.totalorder %s15, 0
    %p132 = por %p130, %p131
    %s133 = ssub.s32 %s16, %s42
    %s134 = ssub.s32 %s17, %s38
    %s135 = sor.u32 %s133, %s134
    %s136 = ssub.s32 %s18, %s34
    %s137 = sor.u32 %s135, %s136
    %p138 = scmp.eq.s32.totalorder %s137, 0
    %s140 = sadd.s32 %s139, 1
    %s141 = scalar_select %p138, %s139, %s140
    %p144 = pneg %p138
    %p145 = scmp.eq.s32.totalorder %s9, 7
    %p146 = por %p144, %p145
    %p147 = scmp.ne.s32.totalorder %s139, %s142
    %p148 = scmp.eq.s32.totalorder %s9, 0
    %p149 = por %p147, %p148
    %p150 = scmp.ne.s32.totalorder %s139, %s142
    %p151 = scmp.eq.s32.totalorder %s14, 7
    %p152 = por %p150, %p151
    %p153 = scmp.ne.s32.totalorder %s142, %s143
    %p154 = scmp.eq.s32.totalorder %s14, 0
    %p155 = por %p153, %p154
    %p156 = scmp.ne.s32.totalorder %s142, %s143
    %p157 = scmp.eq.s32.totalorder %s15, 7
    %p158 = por %p156, %p157
    %p160 = scmp.ne.s32.totalorder %s143, %s159
    %p161 = scmp.eq.s32.totalorder %s15, 0
    %p162 = por %p160, %p161
    %p163 = scmp.le.s32.totalorder 1, %s9
    %p164 = scmp.lt.s32.totalorder %s9, 9
    %p165 = pnand %p163, %p164
    %p166 = pneg %p165
    // Predicated region
    $region9: #{_lambda_.4} parent=5 // pred_check
      _
    $region10: #{_lambda_.4} parent=5 // pred_check_branch
      %168 = sbr.rel (%p165) target = $region12
    $region11: #{_lambda_.4} parent=5 // pred_region
      %s169 = ssub.s32 %s9, 1
    $region12: #{_lambda_.4} parent=5 // pred_fallthru
      _
    %p170 = scmp.lt.s32.totalorder %s9, 8
    // Predicated region
    $region13: #{_lambda_.4} parent=5 // pred_check
      %p171 = pneg %p170
    $region14: #{_lambda_.4} parent=5 // pred_check_branch
      %173 = sbr.rel (%p171) target = $region16
    $region15: #{_lambda_.4} parent=5 // pred_region
      // Predicated region
      $region17: #{_lambda_.4} parent=15 // pred_check
        %p174 = pneg %p59
      $region18: #{_lambda_.4} parent=15 // pred_check_branch
        %176 = sbr.rel (%p174) target = $region20
      $region19: #{_lambda_.4} parent=15 // pred_region
        %p177 = scmp.lt.s32.totalorder %s17, 3
        %s178 = scalar_select %p177, %s17, 3
        %p179 = scmp.lt.s32.totalorder %s16, 1
        %s180 = scalar_select %p179, %s16, 1
        %p181 = scmp.lt.s32.totalorder %s18, 0
        %s182 = scalar_select %p181, %s18, 0
        %s183 = sadd.s32 %s182, %s180
        %s184 = smul.addr %s178, 2
        %s185 = sadd.s32 %s183, %s184
        %s186 = smul.addr %s185, 4
        %s187 = scalar_lea.vmem %s0, %s186
      $region20: #{_lambda_.4} parent=15 // pred_fallthru
        _
      // Predicated region
      $region21: #{_lambda_.4} parent=15 // pred_check
        %p188 = pneg %p89
      $region22: #{_lambda_.4} parent=15 // pred_check_branch
        %190 = sbr.rel (%p188) target = $region24
      $region23: #{_lambda_.4} parent=15 // pred_region
        %p191 = scmp.lt.s32.totalorder %s17, 3
        %s192 = scalar_select %p191, %s17, 3
        %p193 = scmp.lt.s32.totalorder %s16, 1
        %s194 = scalar_select %p193, %s16, 1
        %p195 = scmp.lt.s32.totalorder %s19, 0
        %s196 = scalar_select %p195, %s19, 0
        %s197 = sadd.s32 %s196, %s194
        %s198 = smul.addr %s192, 2
        %s199 = sadd.s32 %s197, %s198
        %s200 = sadd.s32 %s199, 8
        %s201 = smul.addr %s200, 4
        %s202 = scalar_lea.vmem %s1, %s201
      $region24: #{_lambda_.4} parent=15 // pred_fallthru
        _
      // Predicated region
      $region25: #{_lambda_.4} parent=15 // pred_check
        %p203 = pneg %p119
      $region26: #{_lambda_.4} parent=15 // pred_check_branch
        %205 = sbr.rel (%p203) target = $region28
      $region27: #{_lambda_.4} parent=15 // pred_region
        %p206 = scmp.lt.s32.totalorder %s17, 3
        %s207 = scalar_select %p206, %s17, 3
        %p208 = scmp.lt.s32.totalorder %s16, 1
        %s209 = scalar_select %p208, %s16, 1
        %p210 = scmp.lt.s32.totalorder %s19, 0
        %s211 = scalar_select %p210, %s19, 0
        %s212 = sadd.s32 %s211, %s209
        %s213 = smul.addr %s207, 2
        %s214 = sadd.s32 %s212, %s213
        %s215 = sadd.s32 %s214, 16
        %s216 = smul.addr %s215, 4
        %s217 = scalar_lea.vmem %s2, %s216
      $region28: #{_lambda_.4} parent=15 // pred_fallthru
        _
    $region16: #{_lambda_.4} parent=5 // pred_fallthru
      _
    %p218 = scmp.le.s32.totalorder 1, %s9
    %p219 = scmp.lt.s32.totalorder %s9, 9
    %p220 = pnand %p218, %p219
    %p221 = pneg %p220
    // Predicated region
    $region29: #{_lambda_.4} parent=5 // pred_check
      _
    $region30: #{_lambda_.4} parent=5 // pred_check_branch
      %223 = sbr.rel (%p220) target = $region32
    $region31: #{_lambda_.4} parent=5 // pred_region
      %s224 = ssub.s32 %s9, 1
      %p225 = scmp.lt.s32.totalorder %s21, 3
      %s226 = scalar_select %p225, %s21, 3
      %p227 = scmp.lt.s32.totalorder %s20, 1
      %s228 = scalar_select %p227, %s20, 1
      %p229 = scmp.lt.s32.totalorder %s22, 0
      %s230 = scalar_select %p229, %s22, 0
      %s231 = sadd.s32 %s230, %s228
      %s232 = smul.addr %s226, 2
      %s233 = sadd.s32 %s231, %s232
      %s234 = smul.addr %s233, 4
      %s235 = scalar_lea.vmem %s0, %s234
      %p236 = pneg %p65
      %p237 = pneg %p62
      %p238 = scmp.lt.s32.totalorder %s21, 3
      %s239 = scalar_select %p238, %s21, 3
      %p240 = scmp.lt.s32.totalorder %s20, 1
      %s241 = scalar_select %p240, %s20, 1
      %p242 = scmp.lt.s32.totalorder %s23, 0
      %s243 = scalar_select %p242, %s23, 0
      %s244 = sadd.s32 %s243, %s241
      %s245 = smul.addr %s239, 2
      %s246 = sadd.s32 %s244, %s245
      %s247 = sadd.s32 %s246, 8
      %s248 = smul.addr %s247, 4
      %s249 = scalar_lea.vmem %s1, %s248
      %p250 = pneg %p95
      %p251 = pneg %p92
      %p252 = scmp.lt.s32.totalorder %s21, 3
      %s253 = scalar_select %p252, %s21, 3
      %p254 = scmp.lt.s32.totalorder %s20, 1
      %s255 = scalar_select %p254, %s20, 1
      %p256 = scmp.lt.s32.totalorder %s23, 0
      %s257 = scalar_select %p256, %s23, 0
      %s258 = sadd.s32 %s257, %s255
      %s259 = smul.addr %s253, 2
      %s260 = sadd.s32 %s258, %s259
      %s261 = sadd.s32 %s260, 16
      %s262 = smul.addr %s261, 4
      %s263 = scalar_lea.vmem %s2, %s262
      %p264 = pneg %p125
      %p265 = pneg %p122
      %p266 = pneg %p155
      %p267 = pneg %p152
      %p268 = scmp.lt.s32.totalorder %s20, 1
      %s269 = scalar_select %p268, %s20, 1
      %p270 = scmp.lt.s32.totalorder %s21, 3
      %s271 = scalar_select %p270, %s21, 3
      %p272 = scmp.lt.s32.totalorder %s22, 0
      %s273 = scalar_select %p272, %s22, 0
      %s274 = sadd.s32 %s273, %s271
      %s275 = smul.addr %s269, 4
      %s276 = sadd.s32 %s274, %s275
      %s277 = smul.addr %s276, 4
      %s278 = scalar_lea.vmem %s3, %s277
      %p279 = scmp.lt.s32.totalorder %s21, 3
      %s280 = scalar_select %p279, %s21, 3
      %p281 = scmp.lt.s32.totalorder %s20, 1
      %s282 = scalar_select %p281, %s20, 1
      %p283 = scmp.lt.s32.totalorder %s22, 0
      %s284 = scalar_select %p283, %s22, 0
      %s285 = sadd.s32 %s284, %s282
      %s286 = smul.addr %s280, 2
      %s287 = sadd.s32 %s285, %s286
      %s288 = smul.addr %s287, 4
      %s289 = scalar_lea.vmem %s0, %s288
      %p290 = scmp.lt.s32.totalorder %s21, 3
      %s291 = scalar_select %p290, %s21, 3
      %p292 = scmp.lt.s32.totalorder %s20, 1
      %s293 = scalar_select %p292, %s20, 1
      %p294 = scmp.lt.s32.totalorder %s23, 0
      %s295 = scalar_select %p294, %s23, 0
      %s296 = sadd.s32 %s295, %s293
      %s297 = smul.addr %s291, 2
      %s298 = sadd.s32 %s296, %s297
      %s299 = sadd.s32 %s298, 8
      %s300 = smul.addr %s299, 4
      %s301 = scalar_lea.vmem %s1, %s300
      %p302 = scmp.lt.s32.totalorder %s21, 3
      %s303 = scalar_select %p302, %s21, 3
      %p304 = scmp.lt.s32.totalorder %s20, 1
      %s305 = scalar_select %p304, %s20, 1
      %p306 = scmp.lt.s32.totalorder %s23, 0
      %s307 = scalar_select %p306, %s23, 0
      %s308 = sadd.s32 %s307, %s305
      %s309 = smul.addr %s303, 2
      %s310 = sadd.s32 %s308, %s309
      %s311 = sadd.s32 %s310, 16
      %s312 = smul.addr %s311, 4
      %s313 = scalar_lea.vmem %s2, %s312
      %p314 = scmp.lt.s32.totalorder %s20, 1
      %s315 = scalar_select %p314, %s20, 1
      %p316 = scmp.lt.s32.totalorder %s21, 3
      %s317 = scalar_select %p316, %s21, 3
      %p318 = scmp.lt.s32.totalorder %s22, 0
      %s319 = scalar_select %p318, %s22, 0
      %s320 = sadd.s32 %s319, %s317
      %s321 = smul.addr %s315, 4
      %s322 = sadd.s32 %s320, %s321
      %s323 = smul.addr %s322, 4
      %s324 = scalar_lea.vmem %s3, %s323
      %p326 = scmp.eq.s32.totalorder %s23, 0
      // Predicated region
      $region33: #{_lambda_.4} parent=31 // pred_check
        %p327 = pneg %p326
      $region34: #{_lambda_.4} parent=31 // pred_check_branch
        %329 = sbr.rel (%p327) target = $region36
      $region35: #{_lambda_.4} parent=31 // pred_region
        %vm330 = vcmask 7168
        %331 = vst.msk [vmem:[#allocation2] sm:$0xff] %vm330, -inf
        %332 = vst.msk [vmem:[#allocation3] sm:$0xff] %vm330, 0.0
        %vm333 = vcmask 64512
        %334 = vst.msk [vmem:[#allocation4] sm:$0xff] %vm333, 0.0
      $region36: #{_lambda_.4} parent=31 // pred_fallthru
        _
      %v335 = vld [vmem:[%s289] sm:$0xf]
      %v336 = vld [vmem:[%s301] sm:$0xf]
      %v337 = vld [vmem:[%s313] sm:$0xf]
      %vm338 = vcmask 64512
      %v340 = vsel %vm338, %v335, 0
      %v343 = vsel %vm338, %v336, 0
      %345 = vmatprep.subr.bf16.mxu0 0
      %346 = vmatpush1.bf16.xpose.msra.mxu0 %v343
      %347 = vmatprep.subr.bf16.mxu0 0
      %348 = vmatpush1.bf16.xpose.msra.mxu0 0
      %349 = vmatprep.subr.bf16.mxu0 0
      %350 = vmatpush1.bf16.xpose.msra.mxu0 0
      %351 = vmatprep.subr.bf16.mxu0 0
      %352 = vmatpush1.bf16.xpose.msra.mxu0 0
      %353 = vmatprep.subr.bf16.mxu0 0
      %354 = vmatpush1.bf16.xpose.msra.mxu0 0
      %355 = vmatprep.subr.bf16.mxu0 0
      %356 = vmatpush1.bf16.xpose.msra.mxu0 0
      %357 = vmatprep.subr.bf16.mxu0 0
      %358 = vmatpush1.bf16.xpose.msra.mxu0 0
      %359 = vmatprep.subr.bf16.mxu0 0
      %360 = vmatpush1.bf16.xpose.msra.mxu0 0
      %361 = vmatprep.subr.bf16.mxu0 0
      %362 = vmatpush1.bf16.xpose.msra.mxu0 0
      %363 = vmatprep.subr.bf16.mxu0 0
      %364 = vmatpush1.bf16.xpose.msra.mxu0 0
      %365 = vmatprep.subr.bf16.mxu0 0
      %366 = vmatpush1.bf16.xpose.msra.mxu0 0
      %367 = vmatprep.subr.bf16.mxu0 0
      %368 = vmatpush1.bf16.xpose.msra.mxu0 0
      %369 = vmatprep.subr.bf16.mxu0 0
      %370 = vmatpush1.bf16.xpose.msra.mxu0 0
      %371 = vmatprep.subr.bf16.mxu0 0
      %372 = vmatpush1.bf16.xpose.msra.mxu0 0
      %373 = vmatprep.subr.bf16.mxu0 0
      %374 = vmatpush1.bf16.xpose.msra.mxu0 0
      %375 = vmatprep.subr.bf16.mxu0 0
      %376 = vmatpush1.bf16.xpose.msra.mxu0 0
      %377 = vmatprep.mubr.bf16.mxu0 0
      %378 = vmatmul.mubr.bf16.gmra.mrb[0].mxu0 %v340
      %v379 = vpop.f32.mrb[0].mxu0
      %v380 = vadd.f32 0.0, %v379
      %v381 = vpop.f32.mrb[0].mxu0
      %v382 = vpop.f32.mrb[0].mxu0
      %v383 = vpop.f32.mrb[0].mxu0
      %384 = vdwg.mxu0
      %v385 = vld [vmem:[#allocation2] sm:$0xff]
      %v386 = vsel %vm338, %v380, -inf
      %387 = vmax.xlane.f32.xlu0 %v386
      %v388 = vpop.xlane.xlu0 %387
      %v389 = vmax.f32 %v385, %v388
      %v390 = vsub.f32 %v385, %v389
      %v391 = vmul.f32 %v390, 1.442695
      %v392 = vpow.pop %v391
      %394 = vset.pattern.permute.xlu0 0
      %395 = vperm.xlu0 %394, %v389
      %v396 = vpop.permute.xlu0 %395
      %v398 = vsub.f32 %v380, %v396
      %v399 = vmul.f32 %v398, 1.442695
      %v400 = vpow.pop %v399
      %v401 = vld [vmem:[#allocation3] sm:$0xff]
      %v402 = vmul.f32 %v392, %v401
      %v403 = vsel %vm338, %v400, 0.0
      %404 = vadd.xlane.f32.xlu0 %v403
      %v405 = vpop.xlane.xlu0 %404
      %v406 = vadd.f32 %v402, %v405
      %vm407 = vcmask 7168
      %408 = vst.msk [vmem:[#allocation3] sm:$0xff] %vm407, %v406
      %v409 = vld [vmem:[#allocation4] sm:$0xff]
      %411 = vset.pattern.permute.xlu0 0
      %412 = vperm.xlu0 %411, %v392
      %v413 = vpop.permute.xlu0 %412
      %v415 = vmul.f32 %v413, %v409
      %v416 = vpack.c.bf16 %v400, %v400
      %v418 = vsel %vm338, %v416, 0
      %vm420 = vcmask 1043456
      %v422 = vsel %vm420, %v337, 0
      %424 = vmatprep.subr.bf16.mxu0 0
      %425 = vmatpush1.bf16.msra.mxu0 %v422
      %426 = vmatprep.subr.bf16.mxu0 0
      %427 = vmatpush1.bf16.msra.mxu0 0
      %428 = vmatprep.subr.bf16.mxu0 0
      %429 = vmatpush1.bf16.msra.mxu0 0
      %430 = vmatprep.subr.bf16.mxu0 0
      %431 = vmatpush1.bf16.msra.mxu0 0
      %432 = vmatprep.subr.bf16.mxu0 0
      %433 = vmatpush1.bf16.msra.mxu0 0
      %434 = vmatprep.subr.bf16.mxu0 0
      %435 = vmatpush1.bf16.msra.mxu0 0
      %436 = vmatprep.subr.bf16.mxu0 0
      %437 = vmatpush1.bf16.msra.mxu0 0
      %438 = vmatprep.subr.bf16.mxu0 0
      %439 = vmatpush1.bf16.msra.mxu0 0
      %440 = vmatprep.subr.bf16.mxu0 0
      %441 = vmatpush1.bf16.msra.mxu0 0
      %442 = vmatprep.subr.bf16.mxu0 0
      %443 = vmatpush1.bf16.msra.mxu0 0
      %444 = vmatprep.subr.bf16.mxu0 0
      %445 = vmatpush1.bf16.msra.mxu0 0
      %446 = vmatprep.subr.bf16.mxu0 0
      %447 = vmatpush1.bf16.msra.mxu0 0
      %448 = vmatprep.subr.bf16.mxu0 0
      %449 = vmatpush1.bf16.msra.mxu0 0
      %450 = vmatprep.subr.bf16.mxu0 0
      %451 = vmatpush1.bf16.msra.mxu0 0
      %452 = vmatprep.subr.bf16.mxu0 0
      %453 = vmatpush1.bf16.msra.mxu0 0
      %454 = vmatprep.subr.bf16.mxu0 0
      %455 = vmatpush1.bf16.msra.mxu0 0
      %456 = vmatprep.mubr.bf16.mxu0 0
      %457 = vmatmul.mubr.bf16.gmra.mrb[0].mxu0 %v418
      %v458 = vpop.f32.mrb[0].mxu0
      %v459 = vadd.f32 0.0, %v458
      %v460 = vpop.f32.mrb[0].mxu0
      %v461 = vpop.f32.mrb[0].mxu0
      %v462 = vpop.f32.mrb[0].mxu0
      %463 = vdwg.mxu0
      %v464 = vadd.f32 %v415, %v459
      %465 = vst.msk [vmem:[#allocation4] sm:$0xff] %vm338, %v464
      %466 = vst.msk [vmem:[#allocation2] sm:$0xff] %vm407, %v389
      // Predicated region
      $region37: #{_lambda_.4} parent=31 // pred_check
        %p467 = pneg %p326
      $region38: #{_lambda_.4} parent=31 // pred_check_branch
        %469 = sbr.rel (%p467) target = $region40
      $region39: #{_lambda_.4} parent=31 // pred_region
        %v470 = vld [vmem:[#allocation3] sm:$0xff]
        %v471 = vrcp.pop %v470
        %v472 = vld [vmem:[#allocation4] sm:$0xff]
        %474 = vset.pattern.permute.xlu0 0
        %475 = vperm.xlu0 %474, %v471
        %v476 = vpop.permute.xlu0 %475
        %v478 = vmul.f32 %v472, %v476
        %v479 = vpack.c.bf16 %v478, %v478
        %vm480 = vcmask 60416
        %481 = vst.msk [vmem:[%s324] sm:$0xf] %vm480, %v479
      $region40: #{_lambda_.4} parent=31 // pred_fallthru
        _
      %p482 = scmp.lt.s32.totalorder %s20, 1
      %s483 = scalar_select %p482, %s20, 1
      %p484 = scmp.lt.s32.totalorder %s21, 3
      %s485 = scalar_select %p484, %s21, 3
      %p486 = scmp.lt.s32.totalorder %s22, 0
      %s487 = scalar_select %p486, %s22, 0
      %s488 = sadd.s32 %s487, %s485
      %s489 = smul.addr %s483, 4
      %s490 = sadd.s32 %s488, %s489
      %s491 = smul.addr %s490, 4
      %s492 = scalar_lea.vmem %s3, %s491
      // Predicated region
      $region41: #{_lambda_.4} parent=31 // pred_check
        %p493 = pneg %p152
      $region42: #{_lambda_.4} parent=31 // pred_check_branch
        %495 = sbr.rel (%p493) target = $region44
      $region43: #{_lambda_.4} parent=31 // pred_region
        _
      $region44: #{_lambda_.4} parent=31 // pred_fallthru
        _
    $region32: #{_lambda_.4} parent=5 // pred_fallthru
      _
    %p496 = scmp.le.s32.totalorder 2, %s9
    // Predicated region
    $region45: #{_lambda_.4} parent=5 // pred_check
      %p497 = pneg %p496
    $region46: #{_lambda_.4} parent=5 // pred_check_branch
      %499 = sbr.rel (%p497) target = $region48
    $region47: #{_lambda_.4} parent=5 // pred_region
      %s500 = ssub.s32 %s9, 2
      // Predicated region
      $region49: #{_lambda_.4} parent=47 // pred_check
        %p501 = pneg %p158
      $region50: #{_lambda_.4} parent=47 // pred_check_branch
        %503 = sbr.rel (%p501) target = $region52
      $region51: #{_lambda_.4} parent=47 // pred_region
        %p504 = scmp.lt.s32.totalorder %s24, 1
        %s505 = scalar_select %p504, %s24, 1
        %p506 = scmp.lt.s32.totalorder %s25, 3
        %s507 = scalar_select %p506, %s25, 3
        %p508 = scmp.lt.s32.totalorder %s26, 0
        %s509 = scalar_select %p508, %s26, 0
        %s510 = sadd.s32 %s509, %s507
        %s511 = smul.addr %s505, 4
        %s512 = sadd.s32 %s510, %s511
        %s513 = smul.addr %s512, 4
        %s514 = scalar_lea.vmem %s3, %s513
      $region52: #{_lambda_.4} parent=47 // pred_fallthru
        _
    $region48: #{_lambda_.4} parent=5 // pred_fallthru
      _
  $region6: #{_lambda_.4} parent=0 // loop_footer
    %s13 = sadd.s32 1, %s9
  $region7: #{_lambda_.4} parent=0 // loop_footer_branch
    %8 = sbr.rel target = $region3
  $region8: #{_lambda_.4} parent=0 // loop_exit
    _

</llo_original>
